<compile_context>
chip_gen: v7x
topology: tpu7x:2x2x1
jax: 0.10.0
libtpu: 0.0.40
codegen_flags: <defaults>
</compile_context>

<pallas_src>
import jax
import jax.numpy as jnp
from jax.experimental import pallas as pl
from jax.experimental.pallas import tpu as pltpu


def _round_up(x, m):
    return ((x + m - 1) // m) * m


def covidnet_forward(x, params, *, tile_m=512):
    """x: (B, Wn, C, H, W) float32 -> logits (B, n_classes)."""
    B, Wn, C, H, W = x.shape
    conv_w = params["conv_w"]            # (n_feats, C, 3, 3)
    conv_b = params["conv_b"]            # (n_feats,)
    fc_w = params["fc_w"]                # (n_classes, n_feats)
    fc_b = params["fc_b"]                # (n_classes,)
    F = conv_w.shape[0]
    n_classes = fc_b.shape[0]

    x2 = x.reshape(B * Wn, C, H, W)

    # ---- im2col glue (plain JAX).  The patch feature axis is ordered
    # (C, kh, kw) channel-major, matching conv_w.reshape(F, C*3*3).
    patches = jax.lax.conv_general_dilated_patches(
        x2, filter_shape=(3, 3), window_strides=(2, 2),
        padding=((1, 1), (1, 1)),
        dimension_numbers=("NCHW", "OIHW", "NCHW"),
    )                                                 # (B*Wn, C*9, OH, OW)
    _, K, OH, OW = patches.shape
    S = OH * OW                                       # spatial positions/frame
    M = B * Wn * S                                    # GEMM rows
    G = B * Wn                                        # pooled groups

    # ---- padded, lane-dense layouts -------------------------------------
    Kp = _round_up(K, 8)                  # contraction dim
    Fp = _round_up(F, 128)                # feature dim  -> lane-dense
    Cp = _round_up(n_classes, 128)        # logits dim   -> lane-dense
    Gp = _round_up(G, 8)                  # pooled-group rows

    tile_m = min(tile_m, _round_up(M, 128))           # multiple of 128
    Mp = _round_up(M, tile_m)
    num_tiles = Mp // tile_m

    # patches as an (Mp, Kp) bf16 slab, rows ordered (b, w, s)
    p2d = patches.transpose(0, 2, 3, 1).reshape(M, K)
    p2d = jnp.pad(p2d, ((0, Mp - M), (0, Kp - K))).astype(jnp.bfloat16)

    # conv weight as (Kp, Fp) bf16; padded feature columns are zero so padded
    # lanes stay exactly 0 through bias(0) + ReLU and never affect the head.
    wmat = jnp.pad(conv_w.reshape(F, K), ((0, Fp - F), (0, Kp - K)))
    wmat = wmat.T.astype(jnp.bfloat16)                        # (Kp, Fp)
    bvec = jnp.pad(conv_b, (0, Fp - F)).reshape(1, Fp)        # (1, Fp) f32

    # one-hot segment matrix: segT[g, r] = 1 iff row r belongs to pooled group
    # g = w*B + b (and r < M).  Zero-padded rows map to no group.
    r = jnp.arange(Mp)
    b_idx = r // (Wn * S)
    w_idx = (r // S) % Wn
    g_of_r = jnp.where(r < M, w_idx * B + b_idx, Gp)          # Gp never matches
    segT = (jnp.arange(Gp)[:, None] == g_of_r[None, :]).astype(jnp.float32)

    # classifier weights, padded to lane-dense (Fp, Cp) / (1, Cp)
    fcw = jnp.pad(fc_w, ((0, Cp - n_classes), (0, Fp - F))).T  # (Fp, Cp) f32
    fcb = jnp.pad(fc_b, (0, Cp - n_classes)).reshape(1, Cp)

    inv_s = 1.0 / float(S)

    def kernel(p_ref, w_ref, b_ref, segT_ref, fcw_ref, fcb_ref, out_ref,
               acc_ref):
        step = pl.program_id(0)

        @pl.when(step == 0)
        def _():
            acc_ref[...] = jnp.zeros_like(acc_ref)

        # conv-as-GEMM tile on the MXU (bf16 in, f32 accumulate) + bias + ReLU
        y = jnp.dot(p_ref[...], w_ref[...], preferred_element_type=jnp.float32)
        y = jnp.maximum(y + b_ref[...], 0.0)                  # (tile_m, Fp)

        # partial spatial sums per (window, batch) group (AdaptiveAvgPool2d(1))
        acc_ref[...] += jnp.dot(segT_ref[...], y,
                                preferred_element_type=jnp.float32)

        @pl.when(step == pl.num_programs(0) - 1)
        def _():
            pooled = acc_ref[...] * inv_s                     # (Gp, Fp) means
            # torch.max(pooled, dim=1): accumulator rows are ordered g = w*B+b
            fused = pooled[0:B, :]
            for w in range(1, Wn):
                fused = jnp.maximum(fused, pooled[w * B:(w + 1) * B, :])
            # Linear(n_feats, n_classes)
            logits = jnp.dot(fused, fcw_ref[...],
                             preferred_element_type=jnp.float32)
            out_ref[...] = logits + fcb_ref[...]

    out_padded = pl.pallas_call(
        kernel,
        out_shape=jax.ShapeDtypeStruct((B, Cp), jnp.float32),
        grid=(num_tiles,),
        in_specs=[
            pl.BlockSpec((tile_m, Kp), lambda i: (i, 0)),     # patches tile
            pl.BlockSpec((Kp, Fp), lambda i: (0, 0)),         # conv weight
            pl.BlockSpec((1, Fp), lambda i: (0, 0)),          # conv bias
            pl.BlockSpec((Gp, tile_m), lambda i: (0, i)),     # segment one-hot
            pl.BlockSpec((Fp, Cp), lambda i: (0, 0)),         # fc weight
            pl.BlockSpec((1, Cp), lambda i: (0, 0)),          # fc bias
        ],
        out_specs=pl.BlockSpec((B, Cp), lambda i: (0, 0)),
        scratch_shapes=[pltpu.VMEM((Gp, Fp), jnp.float32)],
        compiler_params=pltpu.CompilerParams(
            # The pooled-sum accumulator carries across the grid -> sequential.
            dimension_semantics=("arbitrary",),
        ),
    )(p2d, wmat, bvec, segT, fcw, fcb)

    return out_padded[:, :n_classes]


def covidnet_reference(x, params):
    """Plain-JAX f32 reference of the same forward (for a sanity check)."""
    B, Wn, C, H, W = x.shape
    x2 = x.reshape(B * Wn, C, H, W)
    y = jax.lax.conv_general_dilated(
        x2, params["conv_w"], window_strides=(2, 2),
        padding=((1, 1), (1, 1)),
        dimension_numbers=("NCHW", "OIHW", "NCHW"),
        precision=jax.lax.Precision.HIGHEST)
    y = jax.nn.relu(y + params["conv_b"][None, :, None, None])
    pooled = y.mean(axis=(2, 3)).reshape(B, Wn, -1)
    fused = pooled.max(axis=1)
    return fused @ params["fc_w"].T + params["fc_b"]


def init_params(key, *, in_ch, n_feats, n_classes):
    k1, k2, k3, k4 = jax.random.split(key, 4)
    return {
        "conv_w": 0.05 * jax.random.normal(k1, (n_feats, in_ch, 3, 3),
                                           jnp.float32),
        "conv_b": 0.01 * jax.random.normal(k2, (n_feats,), jnp.float32),
        "fc_w": 0.05 * jax.random.normal(k3, (n_classes, n_feats), jnp.float32),
        "fc_b": 0.01 * jax.random.normal(k4, (n_classes,), jnp.float32),
    }


if __name__ == "__main__":
    # x: (batch=2, window=3, channels=3, H=16, W=16); n_feats=32, n_classes=3.
    key = jax.random.PRNGKey(0)
    kx, kp = jax.random.split(key)

    B, Wn, C, H, W = 2, 3, 3, 16, 16
    n_feats, n_classes = 32, 3

    x = jax.random.normal(kx, (B, Wn, C, H, W), jnp.float32)
    params = init_params(kp, in_ch=C, n_feats=n_feats, n_classes=n_classes)

    out = jax.block_until_ready(covidnet_forward(x, params))
    assert out.shape == (B, n_classes), out.shape

    ref = jax.block_until_ready(covidnet_reference(x, params))
    assert jnp.allclose(out, ref, rtol=2e-2, atol=2e-2), (out, ref)

    print("KERNEL_OK")
</pallas_src>

<mosaic_0001>
module attributes {stable_mosaic.version = 11 : i64} {
  func.func @kernel(%arg0: i32, %arg1: memref<384x32xbf16, #tpu.memory_space<vmem>>, %arg2: memref<32x128xbf16, #tpu.memory_space<vmem>>, %arg3: memref<1x128xf32, #tpu.memory_space<vmem>>, %arg4: memref<8x384xf32, #tpu.memory_space<vmem>>, %arg5: memref<128x128xf32, #tpu.memory_space<vmem>>, %arg6: memref<1x128xf32, #tpu.memory_space<vmem>>, %arg7: memref<2x128xf32, #tpu.memory_space<vmem>>, %arg8: memref<8x128xf32, #tpu.memory_space<vmem>>) attributes {dimension_semantics = [#tpu.dimension_semantics<arbitrary>], iteration_bounds = array<i64: 1>, scalar_prefetch = 0 : i64, scratch_operands = 1 : i64, tpu.core_type = #tpu.core_type<tc>, window_params = [{transform_indices = @transform_0, window_bounds = array<i64: 384, 32>}, {pipeline_mode = #tpu.pipeline_mode<synchronous>, transform_indices = @transform_1, window_bounds = array<i64: 32, 128>}, {pipeline_mode = #tpu.pipeline_mode<synchronous>, transform_indices = @transform_2, window_bounds = array<i64: 1, 128>}, {transform_indices = @transform_3, window_bounds = array<i64: 8, 384>}, {pipeline_mode = #tpu.pipeline_mode<synchronous>, transform_indices = @transform_4, window_bounds = array<i64: 128, 128>}, {pipeline_mode = #tpu.pipeline_mode<synchronous>, transform_indices = @transform_5, window_bounds = array<i64: 1, 128>}, {pipeline_mode = #tpu.pipeline_mode<synchronous>, transform_indices = @transform_6, window_bounds = array<i64: 2, 128>}]} {
    %c0_i32 = arith.constant 0 : i32
    %0 = arith.cmpi eq, %arg0, %c0_i32 : i32
    %1 = arith.extui %0 : i1 to i32
    %c0_i32_0 = arith.constant 0 : i32
    %2 = arith.cmpi ne, %1, %c0_i32_0 : i32
    scf.if %2 {
      %cst_16 = arith.constant 0.000000e+00 : f32
      %19 = vector.broadcast %cst_16 : f32 to vector<8x128xf32>
      %c0_17 = arith.constant 0 : index
      %c0_18 = arith.constant 0 : index
      %20 = vector.load %arg8[%c0_17, %c0_18] : memref<8x128xf32, #tpu.memory_space<vmem>>, vector<8x128xf32>
      tpu.vector_store %arg8[%c0_17, %c0_18], %19 {strides = array<i32>} : memref<8x128xf32, #tpu.memory_space<vmem>>, vector<8x128xf32>,
    } else {
    }
    %c0 = arith.constant 0 : index
    %c0_1 = arith.constant 0 : index
    %3 = vector.load %arg1[%c0, %c0_1] : memref<384x32xbf16, #tpu.memory_space<vmem>>, vector<384x32xbf16>
    %c0_2 = arith.constant 0 : index
    %c0_3 = arith.constant 0 : index
    %4 = vector.load %arg2[%c0_2, %c0_3] : memref<32x128xbf16, #tpu.memory_space<vmem>>, vector<32x128xbf16>
    %cst = arith.constant dense<0.000000e+00> : vector<384x128xf32>
    %5 = tpu.matmul %3, %4, %cst {dimension_numbers = #tpu.dot_dimension_numbers<[1], [0], [0], [1], [0, 0, 1, 1], [], []>} : vector<384x32xbf16>, vector<32x128xbf16>, vector<384x128xf32> -> vector<384x128xf32>
    %c0_4 = arith.constant 0 : index
    %c0_5 = arith.constant 0 : index
    %6 = vector.load %arg3[%c0_4, %c0_5] : memref<1x128xf32, #tpu.memory_space<vmem>>, vector<1x128xf32>
    %7 = vector.broadcast %6 : vector<1x128xf32> to vector<384x128xf32>
    %8 = arith.addf %5, %7 : vector<384x128xf32>
    %cst_6 = arith.constant 0.000000e+00 : f32
    %9 = vector.broadcast %cst_6 : f32 to vector<384x128xf32>
    %10 = arith.maximumf %8, %9 : vector<384x128xf32>
    %c0_7 = arith.constant 0 : index
    %c0_8 = arith.constant 0 : index
    %11 = vector.load %arg8[%c0_7, %c0_8] : memref<8x128xf32, #tpu.memory_space<vmem>>, vector<8x128xf32>
    %c0_9 = arith.constant 0 : index
    %c0_10 = arith.constant 0 : index
    %12 = vector.load %arg4[%c0_9, %c0_10] : memref<8x384xf32, #tpu.memory_space<vmem>>, vector<8x384xf32>
    %cst_11 = arith.constant dense<0.000000e+00> : vector<8x128xf32>
    %13 = tpu.matmul %12, %10, %cst_11 {dimension_numbers = #tpu.dot_dimension_numbers<[1], [0], [0], [1], [0, 0, 1, 1], [], []>} : vector<8x384xf32>, vector<384x128xf32>, vector<8x128xf32> -> vector<8x128xf32>
    %14 = arith.addf %11, %13 : vector<8x128xf32>
    %c0_12 = arith.constant 0 : index
    %c0_13 = arith.constant 0 : index
    %15 = vector.load %arg8[%c0_12, %c0_13] : memref<8x128xf32, #tpu.memory_space<vmem>>, vector<8x128xf32>
    tpu.vector_store %arg8[%c0_12, %c0_13], %14 {strides = array<i32>} : memref<8x128xf32, #tpu.memory_space<vmem>>, vector<8x128xf32>,
    %c0_i32_14 = arith.constant 0 : i32
    %16 = arith.cmpi eq, %arg0, %c0_i32_14 : i32
    %17 = arith.extui %16 : i1 to i32
    %c0_i32_15 = arith.constant 0 : i32
    %18 = arith.cmpi ne, %17, %c0_i32_15 : i32
    scf.if %18 {
      %c0_16 = arith.constant 0 : index
      %c0_17 = arith.constant 0 : index
      %19 = vector.load %arg8[%c0_16, %c0_17] : memref<8x128xf32, #tpu.memory_space<vmem>>, vector<8x128xf32>
      %cst_18 = arith.constant 1.562500e-02 : f32
      %20 = vector.broadcast %cst_18 : f32 to vector<8x128xf32>
      %21 = arith.mulf %19, %20 : vector<8x128xf32>
      %22 = vector.extract_strided_slice %21 {offsets = [0, 0], sizes = [2, 128], strides = [1, 1]} : vector<8x128xf32> to vector<2x128xf32>
      %23 = vector.extract_strided_slice %21 {offsets = [2, 0], sizes = [2, 128], strides = [1, 1]} : vector<8x128xf32> to vector<2x128xf32>
      %24 = arith.maximumf %22, %23 : vector<2x128xf32>
      %25 = vector.extract_strided_slice %21 {offsets = [4, 0], sizes = [2, 128], strides = [1, 1]} : vector<8x128xf32> to vector<2x128xf32>
      %26 = arith.maximumf %24, %25 : vector<2x128xf32>
      %c0_19 = arith.constant 0 : index
      %c0_20 = arith.constant 0 : index
      %27 = vector.load %arg5[%c0_19, %c0_20] : memref<128x128xf32, #tpu.memory_space<vmem>>, vector<128x128xf32>
      %cst_21 = arith.constant dense<0.000000e+00> : vector<2x128xf32>
      %28 = tpu.matmul %26, %27, %cst_21 {dimension_numbers = #tpu.dot_dimension_numbers<[1], [0], [0], [1], [0, 0, 1, 1], [], []>} : vector<2x128xf32>, vector<128x128xf32>, vector<2x128xf32> -> vector<2x128xf32>
      %c0_22 = arith.constant 0 : index
      %c0_23 = arith.constant 0 : index
      %29 = vector.load %arg6[%c0_22, %c0_23] : memref<1x128xf32, #tpu.memory_space<vmem>>, vector<1x128xf32>
      %30 = vector.broadcast %29 : vector<1x128xf32> to vector<2x128xf32>
      %31 = arith.addf %28, %30 : vector<2x128xf32>
      %c0_24 = arith.constant 0 : index
      %c0_25 = arith.constant 0 : index
      %32 = vector.load %arg7[%c0_24, %c0_25] : memref<2x128xf32, #tpu.memory_space<vmem>>, vector<2x128xf32>
      tpu.vector_store %arg7[%c0_24, %c0_25], %31 {strides = array<i32>} : memref<2x128xf32, #tpu.memory_space<vmem>>, vector<2x128xf32>,
    } else {
    }
    return
  }
  func.func @transform_0(%arg0: i32) -> (i32, i32) {
    %c0_i32 = arith.constant 0 : i32
    %c0_i32_0 = arith.constant 0 : i32
    return %arg0, %c0_i32 : i32, i32
  }
  func.func @transform_1(%arg0: i32) -> (i32, i32) {
    %c0_i32 = arith.constant 0 : i32
    %c0_i32_0 = arith.constant 0 : i32
    %c0_i32_1 = arith.constant 0 : i32
    return %c0_i32, %c0_i32_0 : i32, i32
  }
  func.func @transform_2(%arg0: i32) -> (i32, i32) {
    %c0_i32 = arith.constant 0 : i32
    %c0_i32_0 = arith.constant 0 : i32
    %c0_i32_1 = arith.constant 0 : i32
    return %c0_i32, %c0_i32_0 : i32, i32
  }
  func.func @transform_3(%arg0: i32) -> (i32, i32) {
    %c0_i32 = arith.constant 0 : i32
    %c0_i32_0 = arith.constant 0 : i32
    return %c0_i32, %arg0 : i32, i32
  }
  func.func @transform_4(%arg0: i32) -> (i32, i32) {
    %c0_i32 = arith.constant 0 : i32
    %c0_i32_0 = arith.constant 0 : i32
    %c0_i32_1 = arith.constant 0 : i32
    return %c0_i32, %c0_i32_0 : i32, i32
  }
  func.func @transform_5(%arg0: i32) -> (i32, i32) {
    %c0_i32 = arith.constant 0 : i32
    %c0_i32_0 = arith.constant 0 : i32
    %c0_i32_1 = arith.constant 0 : i32
    return %c0_i32, %c0_i32_0 : i32, i32
  }
  func.func @transform_6(%arg0: i32) -> (i32, i32) {
    %c0_i32 = arith.constant 0 : i32
    %c0_i32_0 = arith.constant 0 : i32
    %c0_i32_1 = arith.constant 0 : i32
    return %c0_i32, %c0_i32_0 : i32, i32
  }
}

</mosaic_0001>

<llo_original>
// kernel: tpu_custom_call.1
$region0: #{tpu_custom_call.1}
  #allocation0 [shape = 'u32[]', space=smem, size = 0x4, offset = 0x4, fixed_abs, tag = 'smem constant byte address 0x4 - core index']
  #allocation1 [shape = 'u32[144,128]{1,0:T(1,128)}', space=vmem, size = 0x12000, scoped, tag = 'internal scratch']
  #allocation2 [shape = 'f32[8,128]{1,0:T(8,128)}', space=vmem, size = 0x1000, scoped, tag = 'scratch operand']
  %s0 = inlined_call_operand.vmem [shape: bf16[384,32], index: 0, kind: input, shape index: {}]
  %s1 = inlined_call_operand.vmem [shape: bf16[32,128], index: 1, kind: input, shape index: {}]
  %s2 = inlined_call_operand.vmem [shape: f32[1,128], index: 2, kind: input, shape index: {}]
  %s3 = inlined_call_operand.vmem [shape: f32[8,384], index: 3, kind: input, shape index: {}]
  %s4 = inlined_call_operand.vmem [shape: f32[128,128], index: 4, kind: input, shape index: {}]
  %s5 = inlined_call_operand.vmem [shape: f32[1,128], index: 5, kind: input, shape index: {}]
  %s6 = inlined_call_operand.hbm [shape: f32[2,128], index: 6, kind: output, shape index: {}]
  %s7 = sld [smem:[#allocation0]]
  $region42: #{tpu_custom_call.1} parent=0
    _
  %s9 = ssub.s32 1, %s7
  %s10 = scalar_select 0, %s9, %s7
  $region1: #{tpu_custom_call.1} parent=0
    #allocation3 [shape = 'u8[1024]{0}', space=vmem, size = 0x400, scoped, tag = 'output window, operand 0, single buffered']
    #allocation4 [shape = 's32[1]{0}', space=sflag, size = 0x4, scoped, tag = 'scoped memory for tpu_custom_call.1']
    %11 = vsyncpa [#allocation4], 0
    // Predicated region
    $region2: #{tpu_custom_call.1} parent=1 // pred_check
      _
    $region3: #{tpu_custom_call.1} parent=1 // pred_check_branch
      %13 = sbr.rel (0) target = $region5
    $region4: #{tpu_custom_call.1} parent=1 // pred_region
      _
    $region5: #{tpu_custom_call.1} parent=1 // pred_fallthru
      _
    // Predicated region
    $region6: #{tpu_custom_call.1} parent=1 // pred_check
      _
    $region7: #{tpu_custom_call.1} parent=1 // pred_check_branch
      %15 = sbr.rel (0) target = $region9
    $region8: #{tpu_custom_call.1} parent=1 // pred_region
      _
    $region9: #{tpu_custom_call.1} parent=1 // pred_fallthru
      _
    // Predicated region
    $region10: #{tpu_custom_call.1} parent=1 // pred_check
      _
    $region11: #{tpu_custom_call.1} parent=1 // pred_check_branch
      %17 = sbr.rel (0) target = $region13
    $region12: #{tpu_custom_call.1} parent=1 // pred_region
      _
    $region13: #{tpu_custom_call.1} parent=1 // pred_fallthru
      _
    // Predicated region
    $region14: #{tpu_custom_call.1} parent=1 // pred_check
      _
    $region15: #{tpu_custom_call.1} parent=1 // pred_check_branch
      %19 = sbr.rel (0) target = $region17
    $region16: #{tpu_custom_call.1} parent=1 // pred_region
      _
    $region17: #{tpu_custom_call.1} parent=1 // pred_fallthru
      _
    // Predicated region
    $region18: #{tpu_custom_call.1} parent=1 // pred_check
      _
    $region19: #{tpu_custom_call.1} parent=1 // pred_check_branch
      %21 = sbr.rel (0) target = $region21
    $region20: #{tpu_custom_call.1} parent=1 // pred_region
      _
    $region21: #{tpu_custom_call.1} parent=1 // pred_fallthru
      _
    // Predicated region
    $region22: #{tpu_custom_call.1} parent=1 // pred_check
      _
    $region23: #{tpu_custom_call.1} parent=1 // pred_check_branch
      %23 = sbr.rel (0) target = $region25
    $region24: #{tpu_custom_call.1} parent=1 // pred_region
      _
    $region25: #{tpu_custom_call.1} parent=1 // pred_fallthru
      _
    %p25 = scmp.eq.s32.totalorder 0, 0
    // Predicated region
    $region26: #{tpu_custom_call.1} parent=1 // pred_check
      %p26 = pneg %p25
    $region27: #{tpu_custom_call.1} parent=1 // pred_check_branch
      %28 = sbr.rel (%p26) target = $region29
    $region28: #{tpu_custom_call.1} parent=1 // pred_region
      %29 = vst [vmem:[#allocation2] sm:$0xff] 0.0
    $region29: #{tpu_custom_call.1} parent=1 // pred_fallthru
      _
    %v30 = vld [vmem:[%s0] sm:$0xf]
    %v31 = vld [vmem:[%s0 + $0x4] sm:$0xf]
    %v32 = vld [vmem:[%s0 + $0x8] sm:$0xf]
    %v33 = vld [vmem:[%s0 + $0xc] sm:$0xf]
    %v34 = vld [vmem:[%s0 + $0x10] sm:$0xf]
    %v35 = vld [vmem:[%s0 + $0x14] sm:$0xf]
    %v36 = vld [vmem:[%s0 + $0x18] sm:$0xf]
    %v37 = vld [vmem:[%s0 + $0x1c] sm:$0xf]
    %v38 = vld [vmem:[%s0 + $0x20] sm:$0xf]
    %v39 = vld [vmem:[%s0 + $0x24] sm:$0xf]
    %v40 = vld [vmem:[%s0 + $0x28] sm:$0xf]
    %v41 = vld [vmem:[%s0 + $0x2c] sm:$0xf]
    %v42 = vld [vmem:[%s0 + $0x30] sm:$0xf]
    %v43 = vld [vmem:[%s0 + $0x34] sm:$0xf]
    %v44 = vld [vmem:[%s0 + $0x38] sm:$0xf]
    %v45 = vld [vmem:[%s0 + $0x3c] sm:$0xf]
    %v46 = vld [vmem:[%s0 + $0x40] sm:$0xf]
    %v47 = vld [vmem:[%s0 + $0x44] sm:$0xf]
    %v48 = vld [vmem:[%s0 + $0x48] sm:$0xf]
    %v49 = vld [vmem:[%s0 + $0x4c] sm:$0xf]
    %v50 = vld [vmem:[%s0 + $0x50] sm:$0xf]
    %v51 = vld [vmem:[%s0 + $0x54] sm:$0xf]
    %v52 = vld [vmem:[%s0 + $0x58] sm:$0xf]
    %v53 = vld [vmem:[%s0 + $0x5c] sm:$0xf]
    %v54 = vld [vmem:[%s0 + $0x60] sm:$0xf]
    %v55 = vld [vmem:[%s0 + $0x64] sm:$0xf]
    %v56 = vld [vmem:[%s0 + $0x68] sm:$0xf]
    %v57 = vld [vmem:[%s0 + $0x6c] sm:$0xf]
    %v58 = vld [vmem:[%s0 + $0x70] sm:$0xf]
    %v59 = vld [vmem:[%s0 + $0x74] sm:$0xf]
    %v60 = vld [vmem:[%s0 + $0x78] sm:$0xf]
    %v61 = vld [vmem:[%s0 + $0x7c] sm:$0xf]
    %v62 = vld [vmem:[%s0 + $0x80] sm:$0xf]
    %v63 = vld [vmem:[%s0 + $0x84] sm:$0xf]
    %v64 = vld [vmem:[%s0 + $0x88] sm:$0xf]
    %v65 = vld [vmem:[%s0 + $0x8c] sm:$0xf]
    %v66 = vld [vmem:[%s0 + $0x90] sm:$0xf]
    %v67 = vld [vmem:[%s0 + $0x94] sm:$0xf]
    %v68 = vld [vmem:[%s0 + $0x98] sm:$0xf]
    %v69 = vld [vmem:[%s0 + $0x9c] sm:$0xf]
    %v70 = vld [vmem:[%s0 + $0xa0] sm:$0xf]
    %v71 = vld [vmem:[%s0 + $0xa4] sm:$0xf]
    %v72 = vld [vmem:[%s0 + $0xa8] sm:$0xf]
    %v73 = vld [vmem:[%s0 + $0xac] sm:$0xf]
    %v74 = vld [vmem:[%s0 + $0xb0] sm:$0xf]
    %v75 = vld [vmem:[%s0 + $0xb4] sm:$0xf]
    %v76 = vld [vmem:[%s0 + $0xb8] sm:$0xf]
    %v77 = vld [vmem:[%s0 + $0xbc] sm:$0xf]
    %v78 = vld [vmem:[%s1] sm:$0xf]
    %v79 = vld [vmem:[%s1 + $0x4] sm:$0xf]
    %v80 = vld [vmem:[%s1 + $0x8] sm:$0xf]
    %v81 = vld [vmem:[%s1 + $0xc] sm:$0xf]
    %v82 = vld [vmem:[%s2] sm:$0x1]
    %v84 = vlaneseq
    %v85 = vshrl.u32 %v84, 7
    %v86 = vsub.s32 0, %v85
    %v87 = vrot.slane %v82, %v86
    %v137 = vunpack.c.l.b16 %v30
    %v138 = vunpack.c.l.b16 %v31
    %v139 = vunpack.c.l.b16 %v32
    %v140 = vunpack.c.l.b16 %v33
    %v141 = vunpack.c.l.b16 %v34
    %v142 = vunpack.c.l.b16 %v35
    %v143 = vunpack.c.l.b16 %v36
    %v144 = vunpack.c.l.b16 %v37
    %v145 = vunpack.c.l.b16 %v38
    %v146 = vunpack.c.l.b16 %v39
    %v147 = vunpack.c.l.b16 %v40
    %v148 = vunpack.c.l.b16 %v41
    %v149 = vunpack.c.l.b16 %v42
    %v150 = vunpack.c.l.b16 %v43
    %v151 = vunpack.c.l.b16 %v44
    %v152 = vunpack.c.l.b16 %v45
    %v153 = vunpack.c.l.b16 %v46
    %v154 = vunpack.c.l.b16 %v47
    %v155 = vunpack.c.l.b16 %v48
    %v156 = vunpack.c.l.b16 %v49
    %v157 = vunpack.c.l.b16 %v50
    %v158 = vunpack.c.l.b16 %v51
    %v159 = vunpack.c.l.b16 %v52
    %v160 = vunpack.c.l.b16 %v53
    %v161 = vunpack.c.l.b16 %v54
    %v162 = vunpack.c.l.b16 %v55
    %v163 = vunpack.c.l.b16 %v56
    %v164 = vunpack.c.l.b16 %v57
    %v165 = vunpack.c.l.b16 %v58
    %v166 = vunpack.c.l.b16 %v59
    %v167 = vunpack.c.l.b16 %v60
    %v168 = vunpack.c.l.b16 %v61
    %v169 = vunpack.c.l.b16 %v62
    %v170 = vunpack.c.l.b16 %v63
    %v171 = vunpack.c.l.b16 %v64
    %v172 = vunpack.c.l.b16 %v65
    %v173 = vunpack.c.l.b16 %v66
    %v174 = vunpack.c.l.b16 %v67
    %v175 = vunpack.c.l.b16 %v68
    %v176 = vunpack.c.l.b16 %v69
    %v177 = vunpack.c.l.b16 %v70
    %v178 = vunpack.c.l.b16 %v71
    %v179 = vunpack.c.l.b16 %v72
    %v180 = vunpack.c.l.b16 %v73
    %v181 = vunpack.c.l.b16 %v74
    %v182 = vunpack.c.l.b16 %v75
    %v183 = vunpack.c.l.b16 %v76
    %v184 = vunpack.c.l.b16 %v77
    %v185 = vpack.c.b16 %v138, %v137
    %v186 = vpack.c.b16 %v140, %v139
    %v187 = vpack.c.b16 %v142, %v141
    %v188 = vpack.c.b16 %v144, %v143
    %v189 = vpack.c.b16 %v146, %v145
    %v190 = vpack.c.b16 %v148, %v147
    %v191 = vpack.c.b16 %v150, %v149
    %v192 = vpack.c.b16 %v152, %v151
    %v193 = vpack.c.b16 %v154, %v153
    %v194 = vpack.c.b16 %v156, %v155
    %v195 = vpack.c.b16 %v158, %v157
    %v196 = vpack.c.b16 %v160, %v159
    %v197 = vpack.c.b16 %v162, %v161
    %v198 = vpack.c.b16 %v164, %v163
    %v199 = vpack.c.b16 %v166, %v165
    %v200 = vpack.c.b16 %v168, %v167
    %v201 = vpack.c.b16 %v170, %v169
    %v202 = vpack.c.b16 %v172, %v171
    %v203 = vpack.c.b16 %v174, %v173
    %v204 = vpack.c.b16 %v176, %v175
    %v205 = vpack.c.b16 %v178, %v177
    %v206 = vpack.c.b16 %v180, %v179
    %v207 = vpack.c.b16 %v182, %v181
    %v208 = vpack.c.b16 %v184, %v183
    %v213 = vunpack.c.l.b16 %v78
    %v214 = vunpack.c.l.b16 %v79
    %v215 = vunpack.c.l.b16 %v80
    %v216 = vunpack.c.l.b16 %v81
    %v217 = vpack.c.b16 %v214, %v213
    %v218 = vpack.c.b16 %v216, %v215
    %vm221 = vcmask 261120
    %v223 = vsel %vm221, %v185, 0
    %v226 = vsel %vm221, %v186, 0
    %v229 = vsel %vm221, %v187, 0
    %v232 = vsel %vm221, %v188, 0
    %v235 = vsel %vm221, %v189, 0
    %v238 = vsel %vm221, %v190, 0
    %v241 = vsel %vm221, %v191, 0
    %v244 = vsel %vm221, %v192, 0
    %v247 = vsel %vm221, %v193, 0
    %v250 = vsel %vm221, %v194, 0
    %v253 = vsel %vm221, %v195, 0
    %v256 = vsel %vm221, %v196, 0
    %v259 = vsel %vm221, %v197, 0
    %v262 = vsel %vm221, %v198, 0
    %v265 = vsel %vm221, %v199, 0
    %v268 = vsel %vm221, %v200, 0
    %v271 = vsel %vm221, %v201, 0
    %v274 = vsel %vm221, %v202, 0
    %v277 = vsel %vm221, %v203, 0
    %v280 = vsel %vm221, %v204, 0
    %v283 = vsel %vm221, %v205, 0
    %v286 = vsel %vm221, %v206, 0
    %v289 = vsel %vm221, %v207, 0
    %v292 = vsel %vm221, %v208, 0
    %294 = vmatprep.subr.bf16.mxu0 0
    %295 = vmatpush1.bf16.msra.mxu0 %v217
    %296 = vmatprep.subr.bf16.mxu0 0
    %297 = vmatpush1.bf16.msra.mxu0 %v218
    %298 = vmatprep.subr.bf16.mxu0 0
    %299 = vmatpush1.bf16.msra.mxu0 0
    %300 = vmatprep.subr.bf16.mxu0 0
    %301 = vmatpush1.bf16.msra.mxu0 0
    %302 = vmatprep.subr.bf16.mxu0 0
    %303 = vmatpush1.bf16.msra.mxu0 0
    %304 = vmatprep.subr.bf16.mxu0 0
    %305 = vmatpush1.bf16.msra.mxu0 0
    %306 = vmatprep.subr.bf16.mxu0 0
    %307 = vmatpush1.bf16.msra.mxu0 0
    %308 = vmatprep.subr.bf16.mxu0 0
    %309 = vmatpush1.bf16.msra.mxu0 0
    %310 = vmatprep.subr.bf16.mxu0 0
    %311 = vmatpush1.bf16.msra.mxu0 0
    %312 = vmatprep.subr.bf16.mxu0 0
    %313 = vmatpush1.bf16.msra.mxu0 0
    %314 = vmatprep.subr.bf16.mxu0 0
    %315 = vmatpush1.bf16.msra.mxu0 0
    %316 = vmatprep.subr.bf16.mxu0 0
    %317 = vmatpush1.bf16.msra.mxu0 0
    %318 = vmatprep.subr.bf16.mxu0 0
    %319 = vmatpush1.bf16.msra.mxu0 0
    %320 = vmatprep.subr.bf16.mxu0 0
    %321 = vmatpush1.bf16.msra.mxu0 0
    %322 = vmatprep.subr.bf16.mxu0 0
    %323 = vmatpush1.bf16.msra.mxu0 0
    %324 = vmatprep.subr.bf16.mxu0 0
    %325 = vmatpush1.bf16.msra.mxu0 0
    %326 = vmatprep.mubr.bf16.mxu0 0
    %327 = vmatmul.mubr.bf16.gmra.mrb[0].mxu0 %v223
    %v328 = vpop.f32.mrb[0].mxu0
    %v329 = vadd.f32 %v87, %v328
    %v330 = vpop.f32.mrb[0].mxu0
    %v331 = vpop.f32.mrb[0].mxu0
    %v332 = vadd.f32 %v87, %v331
    %v333 = vpop.f32.mrb[0].mxu0
    %334 = vmatprep.mubr.bf16.mxu0 0
    %335 = vmatmul.mubr.bf16.gmra.mrb[0].mxu0 %v226
    %v336 = vpop.f32.mrb[0].mxu0
    %v337 = vadd.f32 %v87, %v336
    %v338 = vpop.f32.mrb[0].mxu0
    %v339 = vpop.f32.mrb[0].mxu0
    %v340 = vadd.f32 %v87, %v339
    %v341 = vpop.f32.mrb[0].mxu0
    %342 = vmatprep.mubr.bf16.mxu0 0
    %343 = vmatmul.mubr.bf16.gmra.mrb[0].mxu0 %v229
    %v344 = vpop.f32.mrb[0].mxu0
    %v345 = vadd.f32 %v87, %v344
    %v346 = vpop.f32.mrb[0].mxu0
    %v347 = vpop.f32.mrb[0].mxu0
    %v348 = vadd.f32 %v87, %v347
    %v349 = vpop.f32.mrb[0].mxu0
    %350 = vmatprep.mubr.bf16.mxu0 0
    %351 = vmatmul.mubr.bf16.gmra.mrb[0].mxu0 %v232
    %v352 = vpop.f32.mrb[0].mxu0
    %v353 = vadd.f32 %v87, %v352
    %v354 = vpop.f32.mrb[0].mxu0
    %v355 = vpop.f32.mrb[0].mxu0
    %v356 = vadd.f32 %v87, %v355
    %v357 = vpop.f32.mrb[0].mxu0
    %358 = vmatprep.mubr.bf16.mxu0 0
    %359 = vmatmul.mubr.bf16.gmra.mrb[0].mxu0 %v235
    %v360 = vpop.f32.mrb[0].mxu0
    %v361 = vadd.f32 %v87, %v360
    %v362 = vpop.f32.mrb[0].mxu0
    %v363 = vpop.f32.mrb[0].mxu0
    %v364 = vadd.f32 %v87, %v363
    %v365 = vpop.f32.mrb[0].mxu0
    %366 = vmatprep.mubr.bf16.mxu0 0
    %367 = vmatmul.mubr.bf16.gmra.mrb[0].mxu0 %v238
    %v368 = vpop.f32.mrb[0].mxu0
    %v369 = vadd.f32 %v87, %v368
    %v370 = vpop.f32.mrb[0].mxu0
    %v371 = vpop.f32.mrb[0].mxu0
    %v372 = vadd.f32 %v87, %v371
    %v373 = vpop.f32.mrb[0].mxu0
    %374 = vmatprep.mubr.bf16.mxu0 0
    %375 = vmatmul.mubr.bf16.gmra.mrb[0].mxu0 %v241
    %v376 = vpop.f32.mrb[0].mxu0
    %v377 = vadd.f32 %v87, %v376
    %v378 = vpop.f32.mrb[0].mxu0
    %v379 = vpop.f32.mrb[0].mxu0
    %v380 = vadd.f32 %v87, %v379
    %v381 = vpop.f32.mrb[0].mxu0
    %382 = vmatprep.mubr.bf16.mxu0 0
    %383 = vmatmul.mubr.bf16.gmra.mrb[0].mxu0 %v244
    %v384 = vpop.f32.mrb[0].mxu0
    %v385 = vadd.f32 %v87, %v384
    %v386 = vpop.f32.mrb[0].mxu0
    %v387 = vpop.f32.mrb[0].mxu0
    %v388 = vadd.f32 %v87, %v387
    %v389 = vpop.f32.mrb[0].mxu0
    %390 = vmatprep.mubr.bf16.mxu0 0
    %391 = vmatmul.mubr.bf16.gmra.mrb[0].mxu0 %v247
    %v392 = vpop.f32.mrb[0].mxu0
    %v393 = vadd.f32 %v87, %v392
    %v394 = vpop.f32.mrb[0].mxu0
    %v395 = vpop.f32.mrb[0].mxu0
    %v396 = vadd.f32 %v87, %v395
    %v397 = vpop.f32.mrb[0].mxu0
    %398 = vmatprep.mubr.bf16.mxu0 0
    %399 = vmatmul.mubr.bf16.gmra.mrb[0].mxu0 %v250
    %v400 = vpop.f32.mrb[0].mxu0
    %v401 = vadd.f32 %v87, %v400
    %v402 = vpop.f32.mrb[0].mxu0
    %v403 = vpop.f32.mrb[0].mxu0
    %v404 = vadd.f32 %v87, %v403
    %v405 = vpop.f32.mrb[0].mxu0
    %406 = vmatprep.mubr.bf16.mxu0 0
    %407 = vmatmul.mubr.bf16.gmra.mrb[0].mxu0 %v253
    %v408 = vpop.f32.mrb[0].mxu0
    %v409 = vadd.f32 %v87, %v408
    %v410 = vpop.f32.mrb[0].mxu0
    %v411 = vpop.f32.mrb[0].mxu0
    %v412 = vadd.f32 %v87, %v411
    %v413 = vpop.f32.mrb[0].mxu0
    %414 = vmatprep.mubr.bf16.mxu0 0
    %415 = vmatmul.mubr.bf16.gmra.mrb[0].mxu0 %v256
    %v416 = vpop.f32.mrb[0].mxu0
    %v417 = vadd.f32 %v87, %v416
    %v418 = vpop.f32.mrb[0].mxu0
    %v419 = vpop.f32.mrb[0].mxu0
    %v420 = vadd.f32 %v87, %v419
    %v421 = vpop.f32.mrb[0].mxu0
    %422 = vmatprep.mubr.bf16.mxu0 0
    %423 = vmatmul.mubr.bf16.gmra.mrb[0].mxu0 %v259
    %v424 = vpop.f32.mrb[0].mxu0
    %v425 = vadd.f32 %v87, %v424
    %v426 = vpop.f32.mrb[0].mxu0
    %v427 = vpop.f32.mrb[0].mxu0
    %v428 = vadd.f32 %v87, %v427
    %v429 = vpop.f32.mrb[0].mxu0
    %430 = vmatprep.mubr.bf16.mxu0 0
    %431 = vmatmul.mubr.bf16.gmra.mrb[0].mxu0 %v262
    %v432 = vpop.f32.mrb[0].mxu0
    %v433 = vadd.f32 %v87, %v432
    %v434 = vpop.f32.mrb[0].mxu0
    %v435 = vpop.f32.mrb[0].mxu0
    %v436 = vadd.f32 %v87, %v435
    %v437 = vpop.f32.mrb[0].mxu0
    %438 = vmatprep.mubr.bf16.mxu0 0
    %439 = vmatmul.mubr.bf16.gmra.mrb[0].mxu0 %v265
    %v440 = vpop.f32.mrb[0].mxu0
    %v441 = vadd.f32 %v87, %v440
    %v442 = vpop.f32.mrb[0].mxu0
    %v443 = vpop.f32.mrb[0].mxu0
    %v444 = vadd.f32 %v87, %v443
    %v445 = vpop.f32.mrb[0].mxu0
    %446 = vmatprep.mubr.bf16.mxu0 0
    %447 = vmatmul.mubr.bf16.gmra.mrb[0].mxu0 %v268
    %v448 = vpop.f32.mrb[0].mxu0
    %v449 = vadd.f32 %v87, %v448
    %v450 = vpop.f32.mrb[0].mxu0
    %v451 = vpop.f32.mrb[0].mxu0
    %v452 = vadd.f32 %v87, %v451
    %v453 = vpop.f32.mrb[0].mxu0
    %454 = vmatprep.mubr.bf16.mxu0 0
    %455 = vmatmul.mubr.bf16.gmra.mrb[0].mxu0 %v271
    %v456 = vpop.f32.mrb[0].mxu0
    %v457 = vadd.f32 %v87, %v456
    %v458 = vpop.f32.mrb[0].mxu0
    %v459 = vpop.f32.mrb[0].mxu0
    %v460 = vadd.f32 %v87, %v459
    %v461 = vpop.f32.mrb[0].mxu0
    %462 = vmatprep.mubr.bf16.mxu0 0
    %463 = vmatmul.mubr.bf16.gmra.mrb[0].mxu0 %v274
    %v464 = vpop.f32.mrb[0].mxu0
    %v465 = vadd.f32 %v87, %v464
    %v466 = vpop.f32.mrb[0].mxu0
    %v467 = vpop.f32.mrb[0].mxu0
    %v468 = vadd.f32 %v87, %v467
    %v469 = vpop.f32.mrb[0].mxu0
    %470 = vmatprep.mubr.bf16.mxu0 0
    %471 = vmatmul.mubr.bf16.gmra.mrb[0].mxu0 %v277
    %v472 = vpop.f32.mrb[0].mxu0
    %v473 = vadd.f32 %v87, %v472
    %v474 = vpop.f32.mrb[0].mxu0
    %v475 = vpop.f32.mrb[0].mxu0
    %v476 = vadd.f32 %v87, %v475
    %v477 = vpop.f32.mrb[0].mxu0
    %478 = vmatprep.mubr.bf16.mxu0 0
    %479 = vmatmul.mubr.bf16.gmra.mrb[0].mxu0 %v280
    %v480 = vpop.f32.mrb[0].mxu0
    %v481 = vadd.f32 %v87, %v480
    %v482 = vpop.f32.mrb[0].mxu0
    %v483 = vpop.f32.mrb[0].mxu0
    %v484 = vadd.f32 %v87, %v483
    %v485 = vpop.f32.mrb[0].mxu0
    %486 = vmatprep.mubr.bf16.mxu0 0
    %487 = vmatmul.mubr.bf16.gmra.mrb[0].mxu0 %v283
    %v488 = vpop.f32.mrb[0].mxu0
    %v489 = vadd.f32 %v87, %v488
    %v490 = vpop.f32.mrb[0].mxu0
    %v491 = vpop.f32.mrb[0].mxu0
    %v492 = vadd.f32 %v87, %v491
    %v493 = vpop.f32.mrb[0].mxu0
    %494 = vmatprep.mubr.bf16.mxu0 0
    %495 = vmatmul.mubr.bf16.gmra.mrb[0].mxu0 %v286
    %v496 = vpop.f32.mrb[0].mxu0
    %v497 = vadd.f32 %v87, %v496
    %v498 = vpop.f32.mrb[0].mxu0
    %v499 = vpop.f32.mrb[0].mxu0
    %v500 = vadd.f32 %v87, %v499
    %v501 = vpop.f32.mrb[0].mxu0
    %502 = vmatprep.mubr.bf16.mxu0 0
    %503 = vmatmul.mubr.bf16.gmra.mrb[0].mxu0 %v289
    %v504 = vpop.f32.mrb[0].mxu0
    %v505 = vadd.f32 %v87, %v504
    %v506 = vpop.f32.mrb[0].mxu0
    %v507 = vpop.f32.mrb[0].mxu0
    %v508 = vadd.f32 %v87, %v507
    %v509 = vpop.f32.mrb[0].mxu0
    %510 = vmatprep.mubr.bf16.mxu0 0
    %511 = vmatmul.mubr.bf16.gmra.mrb[0].mxu0 %v292
    %v512 = vpop.f32.mrb[0].mxu0
    %v513 = vadd.f32 %v87, %v512
    %v514 = vpop.f32.mrb[0].mxu0
    %v515 = vpop.f32.mrb[0].mxu0
    %v516 = vadd.f32 %v87, %v515
    %v517 = vpop.f32.mrb[0].mxu0
    %518 = vdwg.mxu0
    %v519 = vmax.f32 %v329, 0.0
    %v520 = vmax.f32 %v332, 0.0
    %v521 = vmax.f32 %v337, 0.0
    %v522 = vmax.f32 %v340, 0.0
    %v523 = vmax.f32 %v345, 0.0
    %v524 = vmax.f32 %v348, 0.0
    %v525 = vmax.f32 %v353, 0.0
    %v526 = vmax.f32 %v356, 0.0
    %v527 = vmax.f32 %v361, 0.0
    %v528 = vmax.f32 %v364, 0.0
    %v529 = vmax.f32 %v369, 0.0
    %v530 = vmax.f32 %v372, 0.0
    %v531 = vmax.f32 %v377, 0.0
    %v532 = vmax.f32 %v380, 0.0
    %v533 = vmax.f32 %v385, 0.0
    %v534 = vmax.f32 %v388, 0.0
    %v535 = vmax.f32 %v393, 0.0
    %v536 = vmax.f32 %v396, 0.0
    %v537 = vmax.f32 %v401, 0.0
    %v538 = vmax.f32 %v404, 0.0
    %v539 = vmax.f32 %v409, 0.0
    %v540 = vmax.f32 %v412, 0.0
    %v541 = vmax.f32 %v417, 0.0
    %v542 = vmax.f32 %v420, 0.0
    %v543 = vmax.f32 %v425, 0.0
    %v544 = vmax.f32 %v428, 0.0
    %v545 = vmax.f32 %v433, 0.0
    %v546 = vmax.f32 %v436, 0.0
    %v547 = vmax.f32 %v441, 0.0
    %v548 = vmax.f32 %v444, 0.0
    %v549 = vmax.f32 %v449, 0.0
    %v550 = vmax.f32 %v452, 0.0
    %v551 = vmax.f32 %v457, 0.0
    %v552 = vmax.f32 %v460, 0.0
    %v553 = vmax.f32 %v465, 0.0
    %v554 = vmax.f32 %v468, 0.0
    %v555 = vmax.f32 %v473, 0.0
    %v556 = vmax.f32 %v476, 0.0
    %v557 = vmax.f32 %v481, 0.0
    %v558 = vmax.f32 %v484, 0.0
    %v559 = vmax.f32 %v489, 0.0
    %v560 = vmax.f32 %v492, 0.0
    %v561 = vmax.f32 %v497, 0.0
    %v562 = vmax.f32 %v500, 0.0
    %v563 = vmax.f32 %v505, 0.0
    %v564 = vmax.f32 %v508, 0.0
    %v565 = vmax.f32 %v513, 0.0
    %v566 = vmax.f32 %v516, 0.0
    %v567 = vld [vmem:[#allocation2] sm:$0xff]
    %v568 = vld [vmem:[%s3] sm:$0xff]
    %v569 = vld [vmem:[%s3 + $0x8] sm:$0xff]
    %v570 = vld [vmem:[%s3 + $0x10] sm:$0xff]
    %571 = vmatprep.subr.mxu0 0.0
    %572 = vmatpush1.msra.mxu0 %v519
    %573 = vmatprep.subr.mxu0 0.0
    %574 = vmatpush1.msra.mxu0 %v520
    %575 = vmatprep.subr.mxu0 0.0
    %576 = vmatpush1.msra.mxu0 %v521
    %577 = vmatprep.subr.mxu0 0.0
    %578 = vmatpush1.msra.mxu0 %v522
    %579 = vmatprep.subr.mxu0 0.0
    %580 = vmatpush1.msra.mxu0 %v523
    %581 = vmatprep.subr.mxu0 0.0
    %582 = vmatpush1.msra.mxu0 %v524
    %583 = vmatprep.subr.mxu0 0.0
    %584 = vmatpush1.msra.mxu0 %v525
    %585 = vmatprep.subr.mxu0 0.0
    %586 = vmatpush1.msra.mxu0 %v526
    %587 = vmatprep.subr.mxu0 0.0
    %588 = vmatpush1.msra.mxu0 %v527
    %589 = vmatprep.subr.mxu0 0.0
    %590 = vmatpush1.msra.mxu0 %v528
    %591 = vmatprep.subr.mxu0 0.0
    %592 = vmatpush1.msra.mxu0 %v529
    %593 = vmatprep.subr.mxu0 0.0
    %594 = vmatpush1.msra.mxu0 %v530
    %595 = vmatprep.subr.mxu0 0.0
    %596 = vmatpush1.msra.mxu0 %v531
    %597 = vmatprep.subr.mxu0 0.0
    %598 = vmatpush1.msra.mxu0 %v532
    %599 = vmatprep.subr.mxu0 0.0
    %600 = vmatpush1.msra.mxu0 %v533
    %601 = vmatprep.subr.mxu0 0.0
    %602 = vmatpush1.msra.mxu0 %v534
    %603 = vmatprep.subr.mxu0 0.0
    %604 = vmatpush1.msra.mxu0 %v535
    %605 = vmatprep.subr.mxu0 0.0
    %606 = vmatpush1.msra.mxu0 %v536
    %607 = vmatprep.subr.mxu0 0.0
    %608 = vmatpush1.msra.mxu0 %v537
    %609 = vmatprep.subr.mxu0 0.0
    %610 = vmatpush1.msra.mxu0 %v538
    %611 = vmatprep.subr.mxu0 0.0
    %612 = vmatpush1.msra.mxu0 %v539
    %613 = vmatprep.subr.mxu0 0.0
    %614 = vmatpush1.msra.mxu0 %v540
    %615 = vmatprep.subr.mxu0 0.0
    %616 = vmatpush1.msra.mxu0 %v541
    %617 = vmatprep.subr.mxu0 0.0
    %618 = vmatpush1.msra.mxu0 %v542
    %619 = vmatprep.subr.mxu0 0.0
    %620 = vmatpush1.msra.mxu0 %v543
    %621 = vmatprep.subr.mxu0 0.0
    %622 = vmatpush1.msra.mxu0 %v544
    %623 = vmatprep.subr.mxu0 0.0
    %624 = vmatpush1.msra.mxu0 %v545
    %625 = vmatprep.subr.mxu0 0.0
    %626 = vmatpush1.msra.mxu0 %v546
    %627 = vmatprep.subr.mxu0 0.0
    %628 = vmatpush1.msra.mxu0 %v547
    %629 = vmatprep.subr.mxu0 0.0
    %630 = vmatpush1.msra.mxu0 %v548
    %631 = vmatprep.subr.mxu0 0.0
    %632 = vmatpush1.msra.mxu0 %v549
    %633 = vmatprep.subr.mxu0 0.0
    %634 = vmatpush1.msra.mxu0 %v550
    %635 = vmatprep.mubr.f32.mxu0 %v569
    %636 = vmatmul.mubr.f32.gmra.mrb[0].mxu0 %v568
    %v637 = vpop.f32.mrb[0].mxu0
    %v638 = vadd.f32 0.0, %v637
    %v639 = vpop.f32.mrb[0].mxu0
    %640 = vdwg.mxu0
    %641 = vmatprep.subr.mxu0 0.0
    %642 = vmatpush1.msra.mxu0 %v551
    %643 = vmatprep.subr.mxu0 0.0
    %644 = vmatpush1.msra.mxu0 %v552
    %645 = vmatprep.subr.mxu0 0.0
    %646 = vmatpush1.msra.mxu0 %v553
    %647 = vmatprep.subr.mxu0 0.0
    %648 = vmatpush1.msra.mxu0 %v554
    %649 = vmatprep.subr.mxu0 0.0
    %650 = vmatpush1.msra.mxu0 %v555
    %651 = vmatprep.subr.mxu0 0.0
    %652 = vmatpush1.msra.mxu0 %v556
    %653 = vmatprep.subr.mxu0 0.0
    %654 = vmatpush1.msra.mxu0 %v557
    %655 = vmatprep.subr.mxu0 0.0
    %656 = vmatpush1.msra.mxu0 %v558
    %657 = vmatprep.subr.mxu0 0.0
    %658 = vmatpush1.msra.mxu0 %v559
    %659 = vmatprep.subr.mxu0 0.0
    %660 = vmatpush1.msra.mxu0 %v560
    %661 = vmatprep.subr.mxu0 0.0
    %662 = vmatpush1.msra.mxu0 %v561
    %663 = vmatprep.subr.mxu0 0.0
    %664 = vmatpush1.msra.mxu0 %v562
    %665 = vmatprep.subr.mxu0 0.0
    %666 = vmatpush1.msra.mxu0 %v563
    %667 = vmatprep.subr.mxu0 0.0
    %668 = vmatpush1.msra.mxu0 %v564
    %669 = vmatprep.subr.mxu0 0.0
    %670 = vmatpush1.msra.mxu0 %v565
    %671 = vmatprep.subr.mxu0 0.0
    %672 = vmatpush1.msra.mxu0 %v566
    %673 = vmatprep.subr.mxu0 0.0
    %674 = vmatpush1.msra.mxu0 0.0
    %675 = vmatprep.subr.mxu0 0.0
    %676 = vmatpush1.msra.mxu0 0.0
    %677 = vmatprep.subr.mxu0 0.0
    %678 = vmatpush1.msra.mxu0 0.0
    %679 = vmatprep.subr.mxu0 0.0
    %680 = vmatpush1.msra.mxu0 0.0
    %681 = vmatprep.subr.mxu0 0.0
    %682 = vmatpush1.msra.mxu0 0.0
    %683 = vmatprep.subr.mxu0 0.0
    %684 = vmatpush1.msra.mxu0 0.0
    %685 = vmatprep.subr.mxu0 0.0
    %686 = vmatpush1.msra.mxu0 0.0
    %687 = vmatprep.subr.mxu0 0.0
    %688 = vmatpush1.msra.mxu0 0.0
    %689 = vmatprep.subr.mxu0 0.0
    %690 = vmatpush1.msra.mxu0 0.0
    %691 = vmatprep.subr.mxu0 0.0
    %692 = vmatpush1.msra.mxu0 0.0
    %693 = vmatprep.subr.mxu0 0.0
    %694 = vmatpush1.msra.mxu0 0.0
    %695 = vmatprep.subr.mxu0 0.0
    %696 = vmatpush1.msra.mxu0 0.0
    %697 = vmatprep.subr.mxu0 0.0
    %698 = vmatpush1.msra.mxu0 0.0
    %699 = vmatprep.subr.mxu0 0.0
    %700 = vmatpush1.msra.mxu0 0.0
    %701 = vmatprep.subr.mxu0 0.0
    %702 = vmatpush1.msra.mxu0 0.0
    %703 = vmatprep.subr.mxu0 0.0
    %704 = vmatpush1.msra.mxu0 0.0
    %705 = vmatprep.mubr.f32.mxu0 0.0
    %706 = vmatmul.mubr.f32.gmra.mrb[0].mxu0 %v570
    %v707 = vpop.f32.mrb[0].mxu0
    %v708 = vadd.f32 %v638, %v707
    %v709 = vpop.f32.mrb[0].mxu0
    %710 = vdwg.mxu0
    %v711 = vadd.f32 %v567, %v708
    %712 = vst [vmem:[#allocation2] sm:$0xff] %v711
    // Predicated region
    $region30: #{tpu_custom_call.1} parent=1 // pred_check
      %p713 = pneg %p25
    $region31: #{tpu_custom_call.1} parent=1 // pred_check_branch
      %715 = sbr.rel (%p713) target = $region33
    $region32: #{tpu_custom_call.1} parent=1 // pred_region
      %v716 = vld [vmem:[#allocation2] sm:$0xff]
      %v717 = vmul.f32 %v716, 0.015625
      %v719 = vrot.slane %v717, 2
      %v721 = vmax.f32 %v717, %v719
      %v722 = vrot.slane %v717, 4
      %v724 = vmax.f32 %v721, %v722
      %v725 = vld [vmem:[%s4] sm:$0xff]
      %v726 = vld [vmem:[%s4 + $0x8] sm:$0xff]
      %v727 = vld [vmem:[%s4 + $0x10] sm:$0xff]
      %v728 = vld [vmem:[%s4 + $0x18] sm:$0xff]
      %v729 = vld [vmem:[%s4 + $0x20] sm:$0xff]
      %v730 = vld [vmem:[%s4 + $0x28] sm:$0xff]
      %v731 = vld [vmem:[%s4 + $0x30] sm:$0xff]
      %v732 = vld [vmem:[%s4 + $0x38] sm:$0xff]
      %v733 = vld [vmem:[%s4 + $0x40] sm:$0xff]
      %v734 = vld [vmem:[%s4 + $0x48] sm:$0xff]
      %v735 = vld [vmem:[%s4 + $0x50] sm:$0xff]
      %v736 = vld [vmem:[%s4 + $0x58] sm:$0xff]
      %v737 = vld [vmem:[%s4 + $0x60] sm:$0xff]
      %v738 = vld [vmem:[%s4 + $0x68] sm:$0xff]
      %v739 = vld [vmem:[%s4 + $0x70] sm:$0xff]
      %v740 = vld [vmem:[%s4 + $0x78] sm:$0xff]
      %v741 = vld [vmem:[%s5] sm:$0x1]
      %v743 = vlaneseq
      %v744 = vshrl.u32 %v743, 7
      %v745 = vsub.s32 0, %v744
      %v746 = vrot.slane %v741, %v745
      %748 = vmatprep.subr.mxu0 0.0
      %749 = vmatpush1.msra.mxu0 %v725
      %750 = vmatprep.subr.mxu0 0.0
      %751 = vmatpush1.msra.mxu0 %v726
      %752 = vmatprep.subr.mxu0 0.0
      %753 = vmatpush1.msra.mxu0 %v727
      %754 = vmatprep.subr.mxu0 0.0
      %755 = vmatpush1.msra.mxu0 %v728
      %756 = vmatprep.subr.mxu0 0.0
      %757 = vmatpush1.msra.mxu0 %v729
      %758 = vmatprep.subr.mxu0 0.0
      %759 = vmatpush1.msra.mxu0 %v730
      %760 = vmatprep.subr.mxu0 0.0
      %761 = vmatpush1.msra.mxu0 %v731
      %762 = vmatprep.subr.mxu0 0.0
      %763 = vmatpush1.msra.mxu0 %v732
      %764 = vmatprep.subr.mxu0 0.0
      %765 = vmatpush1.msra.mxu0 %v733
      %766 = vmatprep.subr.mxu0 0.0
      %767 = vmatpush1.msra.mxu0 %v734
      %768 = vmatprep.subr.mxu0 0.0
      %769 = vmatpush1.msra.mxu0 %v735
      %770 = vmatprep.subr.mxu0 0.0
      %771 = vmatpush1.msra.mxu0 %v736
      %772 = vmatprep.subr.mxu0 0.0
      %773 = vmatpush1.msra.mxu0 %v737
      %774 = vmatprep.subr.mxu0 0.0
      %775 = vmatpush1.msra.mxu0 %v738
      %776 = vmatprep.subr.mxu0 0.0
      %777 = vmatpush1.msra.mxu0 %v739
      %778 = vmatprep.subr.mxu0 0.0
      %779 = vmatpush1.msra.mxu0 %v740
      %780 = vmatprep.subr.mxu0 0.0
      %781 = vmatpush1.msra.mxu0 0.0
      %782 = vmatprep.subr.mxu0 0.0
      %783 = vmatpush1.msra.mxu0 0.0
      %784 = vmatprep.subr.mxu0 0.0
      %785 = vmatpush1.msra.mxu0 0.0
      %786 = vmatprep.subr.mxu0 0.0
      %787 = vmatpush1.msra.mxu0 0.0
      %788 = vmatprep.subr.mxu0 0.0
      %789 = vmatpush1.msra.mxu0 0.0
      %790 = vmatprep.subr.mxu0 0.0
      %791 = vmatpush1.msra.mxu0 0.0
      %792 = vmatprep.subr.mxu0 0.0
      %793 = vmatpush1.msra.mxu0 0.0
      %794 = vmatprep.subr.mxu0 0.0
      %795 = vmatpush1.msra.mxu0 0.0
      %796 = vmatprep.subr.mxu0 0.0
      %797 = vmatpush1.msra.mxu0 0.0
      %798 = vmatprep.subr.mxu0 0.0
      %799 = vmatpush1.msra.mxu0 0.0
      %800 = vmatprep.subr.mxu0 0.0
      %801 = vmatpush1.msra.mxu0 0.0
      %802 = vmatprep.subr.mxu0 0.0
      %803 = vmatpush1.msra.mxu0 0.0
      %804 = vmatprep.subr.mxu0 0.0
      %805 = vmatpush1.msra.mxu0 0.0
      %806 = vmatprep.subr.mxu0 0.0
      %807 = vmatpush1.msra.mxu0 0.0
      %808 = vmatprep.subr.mxu0 0.0
      %809 = vmatpush1.msra.mxu0 0.0
      %810 = vmatprep.subr.mxu0 0.0
      %811 = vmatpush1.msra.mxu0 0.0
      %812 = vmatprep.mubr.f32.mxu0 0.0
      %813 = vmatmul.mubr.f32.gmra.mrb[0].mxu0 %v724
      %v814 = vpop.f32.mrb[0].mxu0
      %v815 = vadd.f32 %v746, %v814
      %v816 = vpop.f32.mrb[0].mxu0
      %817 = vdwg.mxu0
      %818 = vst [vmem:[#allocation3] sm:$0x3] %v815
    $region33: #{tpu_custom_call.1} parent=1 // pred_fallthru
      _
    // Predicated region
    $region34: #{tpu_custom_call.1} parent=1 // pred_check
      _
    $region35: #{tpu_custom_call.1} parent=1 // pred_check_branch
      %820 = sbr.rel (0) target = $region37
    $region36: #{tpu_custom_call.1} parent=1 // pred_region
      %s822 = ssub.s32 32, 32
      %823 = vsyncadd [#allocation4], %s822
      %s825 = sshll.u32 [#allocation3], 4
      %s826 = int_to_ptr.vmem [resolvable:$true] %s825
      %828 = dma.vmem_to_hbm [thread:$0]  %s826, 32, %s6, [#allocation4]
    $region37: #{tpu_custom_call.1} parent=1 // pred_fallthru
      _
    // Predicated region
    $region38: #{tpu_custom_call.1} parent=1 // pred_check
      _
    $region39: #{tpu_custom_call.1} parent=1 // pred_check_branch
      %830 = sbr.rel (0) target = $region41
    $region40: #{tpu_custom_call.1} parent=1 // pred_region
      %831 = dma.done [#allocation4], 32
    $region41: #{tpu_custom_call.1} parent=1 // pred_fallthru
      _
    %832 = vsyncpa [#allocation4], 1

</llo_original>
